<compile_context>
chip_gen: v7x
topology: tpu7x:2x2x1
jax: 0.10.0
libtpu: 0.0.40
codegen_flags: <defaults>
</compile_context>

<pallas_src>
import functools

import jax
import jax.numpy as jnp
from jax.experimental import pallas as pl
from jax.experimental.pallas import tpu as pltpu

HIDDEN = 128
SUBLANE = 8
MAX_TILE_B = 2048  # f32 x tile: 2 * 2048 * 896(lane-padded) * 4B ~= 14 MiB + out/W1
                   # ~= 17 MiB total -> covered by the 32 MiB scoped-VMEM override.


def _round_up(x, m):
    return (x + m - 1) // m * m


def disc_kernel(x_ref, w1_ref, b1_ref, w2_ref, b2_ref, o_ref):
    # In-kernel bf16 cast (VPU, hidden under the x-tile DMA) -> native MXU path
    # with f32 accumulation.
    x = x_ref[...].astype(jnp.bfloat16)                    # (tb, D)
    w1 = w1_ref[...].astype(jnp.bfloat16)                  # (D, 128)
    h = jnp.dot(x, w1, preferred_element_type=jnp.float32)  # MXU -> (tb, 128) f32
    h = h + b1_ref[...]                                     # (tb,128) + (1,128)
    # LeakyReLU(0.01) on the VPU.
    h = jnp.where(h > 0, h, 0.01 * h)
    # Second linear has out_features == 1: VPU multiply + lane (XLU) reduction
    # instead of an N=1 MXU pass.  w2_ref holds the weight row (1, 128).
    z = jnp.sum(h * w2_ref[...], axis=-1, keepdims=True)    # (tb, 1) f32
    z = z + b2_ref[0]                                        # scalar bias from SMEM
    # Sigmoid (exp on the EUP).
    o_ref[...] = (1.0 / (1.0 + jnp.exp(-z))).astype(o_ref.dtype)


@functools.partial(jax.jit, static_argnames=("max_tile_b",))
def discriminator_forward(x, w1, b1, w2, b2, *, max_tile_b=MAX_TILE_B):
    """x: (B, D) f32.  w1: (D, 128), b1: (128,), w2: (128,), b2: (1,).

    Weights are stored transposed vs. PyTorch (in_features, out_features) so
    the kernel computes y = x @ W + b directly.
    """
    B, D = x.shape
    assert w1.shape == (D, HIDDEN)

    b1r = jnp.asarray(b1, jnp.float32).reshape(1, HIDDEN)
    w2r = jnp.asarray(w2, jnp.float32).reshape(1, HIDDEN)   # second layer as a row
    b2r = jnp.asarray(b2, jnp.float32).reshape(1)

    # Batch tile: sublane multiple, capped at max_tile_b.  Pad the batch only
    # when it does not divide evenly (no feature-dim pad: block dim == D).
    tile_b = min(_round_up(B, SUBLANE), _round_up(max_tile_b, SUBLANE))
    Bp = _round_up(B, tile_b)
    xp = x if Bp == B else jnp.pad(x, ((0, Bp - B), (0, 0)))

    grid = (Bp // tile_b,)
    out = pl.pallas_call(
        disc_kernel,
        out_shape=jax.ShapeDtypeStruct((Bp, 1), jnp.float32),
        grid_spec=pltpu.PrefetchScalarGridSpec(
            num_scalar_prefetch=0,
            grid=grid,
            in_specs=[
                pl.BlockSpec((tile_b, D), lambda i: (i, 0)),      # x tile (streams)
                pl.BlockSpec((D, HIDDEN), lambda i: (0, 0)),      # W1 (resident)
                pl.BlockSpec((1, HIDDEN), lambda i: (0, 0)),      # b1 (resident)
                pl.BlockSpec((1, HIDDEN), lambda i: (0, 0)),      # w2 row (resident)
                pl.BlockSpec(memory_space=pltpu.MemorySpace.SMEM),  # b2 scalar
            ],
            out_specs=pl.BlockSpec((tile_b, 1), lambda i: (i, 0)),
        ),
        compiler_params=pltpu.CompilerParams(
            dimension_semantics=("parallel",),
            vmem_limit_bytes=32 * 1024 * 1024,
        ),
    )(xp, w1, b1r, w2r, b2r)
    return out if Bp == B else out[:B]


def reference_forward(x, w1, b1, w2, b2):
    h = x @ w1 + b1.reshape(1, -1)
    h = jnp.where(h > 0, h, 0.01 * h)
    z = h @ w2.reshape(-1, 1) + b2.reshape(1, 1)
    return 1.0 / (1.0 + jnp.exp(-z))


if __name__ == "__main__":
    in_features = 784   # flattened 28x28, as in SimpleGAN
    batch = 12          # deliberately not a multiple of 8 to exercise padding

    key = jax.random.PRNGKey(0)
    kx, kx2, k1, k2, k3, k4 = jax.random.split(key, 6)

    x = jax.random.normal(kx, (batch, in_features), dtype=jnp.float32)
    w1 = jax.random.normal(k1, (in_features, HIDDEN), jnp.float32) * (
        1.0 / jnp.sqrt(in_features)
    )
    b1 = jax.random.normal(k2, (HIDDEN,), jnp.float32) * 0.01
    w2 = jax.random.normal(k3, (HIDDEN,), jnp.float32) * (1.0 / jnp.sqrt(HIDDEN))
    b2 = jax.random.normal(k4, (1,), jnp.float32) * 0.01

    out = jax.block_until_ready(discriminator_forward(x, w1, b1, w2, b2))
    ref = reference_forward(x, w1, b1, w2, b2)
    assert out.shape == (batch, 1)
    # In-kernel bf16 matmul operands (f32 accumulation) loosen the tolerance
    # vs the full-f32 reference.
    assert jnp.allclose(out, ref, atol=2e-2, rtol=2e-2), "mismatch vs reference"

    # Multi-tile path: batch padding + streaming x tiles over resident weights.
    batch2 = 44
    x2 = jax.random.normal(kx2, (batch2, in_features), dtype=jnp.float32)
    out2 = jax.block_until_ready(
        discriminator_forward(x2, w1, b1, w2, b2, max_tile_b=16)
    )
    ref2 = reference_forward(x2, w1, b1, w2, b2)
    assert out2.shape == (batch2, 1)
    assert jnp.allclose(out2, ref2, atol=2e-2, rtol=2e-2), "mismatch vs reference (tiled)"

    print("KERNEL_OK")
</pallas_src>

<mosaic_0001>
module attributes {stable_mosaic.version = 11 : i64} {
  func.func @disc_kernel(%arg0: i32, %arg1: memref<16x784xf32, #tpu.memory_space<vmem>>, %arg2: memref<784x128xf32, #tpu.memory_space<vmem>>, %arg3: memref<1x128xf32, #tpu.memory_space<vmem>>, %arg4: memref<1x128xf32, #tpu.memory_space<vmem>>, %arg5: memref<1xf32, #tpu.memory_space<smem>>, %arg6: memref<16x1xf32, #tpu.memory_space<vmem>>) attributes {dimension_semantics = [#tpu.dimension_semantics<parallel>], iteration_bounds = array<i64: 1>, scalar_prefetch = 0 : i64, scratch_operands = 0 : i64, tpu.core_type = #tpu.core_type<tc>, window_params = [{transform_indices = @transform_0, window_bounds = array<i64: 16, 784>}, {pipeline_mode = #tpu.pipeline_mode<synchronous>, transform_indices = @transform_1, window_bounds = array<i64: 784, 128>}, {pipeline_mode = #tpu.pipeline_mode<synchronous>, transform_indices = @transform_2, window_bounds = array<i64: 1, 128>}, {pipeline_mode = #tpu.pipeline_mode<synchronous>, transform_indices = @transform_3, window_bounds = array<i64: 1, 128>}, {transform_indices = @transform_4, window_bounds = array<i64: 1>}, {transform_indices = @transform_5, window_bounds = array<i64: 16, 1>}]} {
    %c0 = arith.constant 0 : index
    %c0_0 = arith.constant 0 : index
    %0 = vector.load %arg1[%c0, %c0_0] : memref<16x784xf32, #tpu.memory_space<vmem>>, vector<16x784xf32>
    %1 = arith.truncf %0 : vector<16x784xf32> to vector<16x784xbf16>
    %c0_1 = arith.constant 0 : index
    %c0_2 = arith.constant 0 : index
    %2 = vector.load %arg2[%c0_1, %c0_2] : memref<784x128xf32, #tpu.memory_space<vmem>>, vector<784x128xf32>
    %3 = arith.truncf %2 : vector<784x128xf32> to vector<784x128xbf16>
    %cst = arith.constant dense<0.000000e+00> : vector<16x128xf32>
    %4 = tpu.matmul %1, %3, %cst {dimension_numbers = #tpu.dot_dimension_numbers<[1], [0], [0], [1], [0, 0, 1, 1], [], []>} : vector<16x784xbf16>, vector<784x128xbf16>, vector<16x128xf32> -> vector<16x128xf32>
    %c0_3 = arith.constant 0 : index
    %c0_4 = arith.constant 0 : index
    %5 = vector.load %arg3[%c0_3, %c0_4] : memref<1x128xf32, #tpu.memory_space<vmem>>, vector<1x128xf32>
    %6 = vector.broadcast %5 : vector<1x128xf32> to vector<16x128xf32>
    %7 = arith.addf %4, %6 : vector<16x128xf32>
    %cst_5 = arith.constant 0.000000e+00 : f32
    %8 = vector.broadcast %cst_5 : f32 to vector<16x128xf32>
    %9 = arith.cmpf ogt, %7, %8 : vector<16x128xf32>
    %cst_6 = arith.constant 0.00999999977 : f32
    %10 = vector.broadcast %cst_6 : f32 to vector<16x128xf32>
    %11 = arith.mulf %10, %7 : vector<16x128xf32>
    %12 = arith.select %9, %7, %11 : vector<16x128xi1>, vector<16x128xf32>
    %c0_7 = arith.constant 0 : index
    %c0_8 = arith.constant 0 : index
    %13 = vector.load %arg4[%c0_7, %c0_8] : memref<1x128xf32, #tpu.memory_space<vmem>>, vector<1x128xf32>
    %14 = vector.broadcast %13 : vector<1x128xf32> to vector<16x128xf32>
    %15 = arith.mulf %12, %14 : vector<16x128xf32>
    %cst_9 = arith.constant dense<0.000000e+00> : vector<16xf32>
    %16 = vector.multi_reduction <add>, %15, %cst_9 [1] : vector<16x128xf32> to vector<16xf32>
    %17 = vector.shape_cast %16 : vector<16xf32> to vector<16x1xf32>
    %c0_10 = arith.constant 0 : index
    %18 = memref.load %arg5[%c0_10] : memref<1xf32, #tpu.memory_space<smem>>
    %19 = vector.broadcast %18 : f32 to vector<16x1xf32>
    %20 = arith.addf %17, %19 : vector<16x1xf32>
    %cst_11 = arith.constant 0.000000e+00 : f32
    %21 = vector.broadcast %cst_11 : f32 to vector<16x1xf32>
    %22 = arith.subf %21, %20 : vector<16x1xf32>
    %23 = math.exp %22 : vector<16x1xf32>
    %cst_12 = arith.constant 1.000000e+00 : f32
    %24 = vector.broadcast %cst_12 : f32 to vector<16x1xf32>
    %25 = arith.addf %24, %23 : vector<16x1xf32>
    %cst_13 = arith.constant 1.000000e+00 : f32
    %26 = vector.broadcast %cst_13 : f32 to vector<16x1xf32>
    %27 = arith.divf %26, %25 : vector<16x1xf32>
    %c0_14 = arith.constant 0 : index
    %c0_15 = arith.constant 0 : index
    %28 = vector.load %arg6[%c0_14, %c0_15] : memref<16x1xf32, #tpu.memory_space<vmem>>, vector<16x1xf32>
    tpu.vector_store %arg6[%c0_14, %c0_15], %27 {strides = array<i32>} : memref<16x1xf32, #tpu.memory_space<vmem>>, vector<16x1xf32>,
    return
  }
  func.func @transform_0(%arg0: i32) -> (i32, i32) {
    %c0_i32 = arith.constant 0 : i32
    %c0_i32_0 = arith.constant 0 : i32
    return %arg0, %c0_i32 : i32, i32
  }
  func.func @transform_1(%arg0: i32) -> (i32, i32) {
    %c0_i32 = arith.constant 0 : i32
    %c0_i32_0 = arith.constant 0 : i32
    %c0_i32_1 = arith.constant 0 : i32
    return %c0_i32, %c0_i32_0 : i32, i32
  }
  func.func @transform_2(%arg0: i32) -> (i32, i32) {
    %c0_i32 = arith.constant 0 : i32
    %c0_i32_0 = arith.constant 0 : i32
    %c0_i32_1 = arith.constant 0 : i32
    return %c0_i32, %c0_i32_0 : i32, i32
  }
  func.func @transform_3(%arg0: i32) -> (i32, i32) {
    %c0_i32 = arith.constant 0 : i32
    %c0_i32_0 = arith.constant 0 : i32
    %c0_i32_1 = arith.constant 0 : i32
    return %c0_i32, %c0_i32_0 : i32, i32
  }
  func.func @transform_4(%arg0: i32) -> i32 {
    %c0_i32 = arith.constant 0 : i32
    %c0_i32_0 = arith.constant 0 : i32
    return %c0_i32 : i32
  }
  func.func @transform_5(%arg0: i32) -> (i32, i32) {
    %c0_i32 = arith.constant 0 : i32
    %c0_i32_0 = arith.constant 0 : i32
    return %arg0, %c0_i32 : i32, i32
  }
}

</mosaic_0001>

<llo_original>
// kernel: discriminator_forward.1
$region0: #{discriminator_forward.1}
  #allocation0 [shape = 'u32[]', space=smem, size = 0x4, offset = 0x4, fixed_abs, tag = 'smem constant byte address 0x4 - core index']
  #allocation1 [shape = 'u32[144,128]{1,0:T(1,128)}', space=vmem, size = 0x12000, scoped, tag = 'internal scratch']
  #allocation2 [shape = 'f32[1]{0:T(128)S(6)}', space=smem, size = 0x200, scoped, tag = 'scoped memory for discriminator_forward.1']
  %s0 = inlined_call_operand.vmem [shape: f32[16,784], index: 0, kind: input, shape index: {}]
  %s1 = inlined_call_operand.hbm [shape: f32[784,128], index: 1, kind: input, shape index: {}]
  %s2 = inlined_call_operand.vmem [shape: f32[1,128], index: 2, kind: input, shape index: {}]
  %s3 = inlined_call_operand.vmem [shape: f32[1,128], index: 3, kind: input, shape index: {}]
  %s4 = inlined_call_operand.<no memory space> [shape: f32[1], index: 4, kind: input, shape index: {}]
  %s5 = inlined_call_operand.vmem [shape: f32[16,1], index: 5, kind: output, shape index: {}]
  %s6 = sld [smem:[#allocation0]]
  $region34: #{discriminator_forward.1} parent=0
    _
  %s8 = ssub.s32 1, %s6
  %s9 = scalar_select 0, %s8, %s6
  %10 = sst [smem:[#allocation2]] %s4
  $region1: #{discriminator_forward.1} parent=0
    #allocation3 [shape = 'u8[401408]{0}', space=vmem, size = 0x62000, scoped, tag = 'input window, operand 1, single buffered']
    #allocation4 [shape = 's32[1]{0}', space=sflag, size = 0x4, scoped, tag = 'scoped memory for discriminator_forward.1']
    %11 = vsyncpa [#allocation4], 0
    // Predicated region
    $region2: #{discriminator_forward.1} parent=1 // pred_check
      _
    $region3: #{discriminator_forward.1} parent=1 // pred_check_branch
      %13 = sbr.rel (0) target = $region5
    $region4: #{discriminator_forward.1} parent=1 // pred_region
      _
    $region5: #{discriminator_forward.1} parent=1 // pred_fallthru
      _
    // Predicated region
    $region6: #{discriminator_forward.1} parent=1 // pred_check
      _
    $region7: #{discriminator_forward.1} parent=1 // pred_check_branch
      %15 = sbr.rel (0) target = $region9
    $region8: #{discriminator_forward.1} parent=1 // pred_region
      %s17 = ssub.s32 12544, 12544
      %18 = vsyncadd [#allocation4], %s17
      %s19 = sshll.u32 [#allocation3], 4
      %s20 = int_to_ptr.vmem [resolvable:$true] %s19
      %25 = dma.hbm_to_vmem [thread:$0]  %s1, 12544, %s20, [#allocation4], 128, 128, 8
    $region9: #{discriminator_forward.1} parent=1 // pred_fallthru
      _
    // Predicated region
    $region10: #{discriminator_forward.1} parent=1 // pred_check
      _
    $region11: #{discriminator_forward.1} parent=1 // pred_check_branch
      %27 = sbr.rel (0) target = $region13
    $region12: #{discriminator_forward.1} parent=1 // pred_region
      _
    $region13: #{discriminator_forward.1} parent=1 // pred_fallthru
      _
    // Predicated region
    $region14: #{discriminator_forward.1} parent=1 // pred_check
      _
    $region15: #{discriminator_forward.1} parent=1 // pred_check_branch
      %29 = sbr.rel (0) target = $region17
    $region16: #{discriminator_forward.1} parent=1 // pred_region
      _
    $region17: #{discriminator_forward.1} parent=1 // pred_fallthru
      _
    // Predicated region
    $region18: #{discriminator_forward.1} parent=1 // pred_check
      _
    $region19: #{discriminator_forward.1} parent=1 // pred_check_branch
      %31 = sbr.rel (0) target = $region21
    $region20: #{discriminator_forward.1} parent=1 // pred_region
      _
    $region21: #{discriminator_forward.1} parent=1 // pred_fallthru
      _
    // Predicated region
    $region22: #{discriminator_forward.1} parent=1 // pred_check
      _
    $region23: #{discriminator_forward.1} parent=1 // pred_check_branch
      %33 = sbr.rel (0) target = $region25
    $region24: #{discriminator_forward.1} parent=1 // pred_region
      %34 = dma.done [#allocation4], 12544
    $region25: #{discriminator_forward.1} parent=1 // pred_fallthru
      _
    %v36 = vld [vmem:[%s0] sm:$0xff]
    %v37 = vld [vmem:[%s0 + $0x8] sm:$0xff]
    %v38 = vld [vmem:[%s0 + $0x10] sm:$0xff]
    %v39 = vld [vmem:[%s0 + $0x18] sm:$0xff]
    %v40 = vld [vmem:[%s0 + $0x20] sm:$0xff]
    %v41 = vld [vmem:[%s0 + $0x28] sm:$0xff]
    %v42 = vld [vmem:[%s0 + $0x30] sm:$0xff]
    %v43 = vld [vmem:[%s0 + $0x38] sm:$0xff]
    %v44 = vld [vmem:[%s0 + $0x40] sm:$0xff]
    %v45 = vld [vmem:[%s0 + $0x48] sm:$0xff]
    %v46 = vld [vmem:[%s0 + $0x50] sm:$0xff]
    %v47 = vld [vmem:[%s0 + $0x58] sm:$0xff]
    %v48 = vld [vmem:[%s0 + $0x60] sm:$0xff]
    %v49 = vld [vmem:[%s0 + $0x68] sm:$0xff]
    %v50 = vpack.c.bf16 %v43, %v36
    %v51 = vpack.c.bf16 %v44, %v37
    %v52 = vpack.c.bf16 %v45, %v38
    %v53 = vpack.c.bf16 %v46, %v39
    %v54 = vpack.c.bf16 %v47, %v40
    %v55 = vpack.c.bf16 %v48, %v41
    %v56 = vpack.c.bf16 %v49, %v42
    %v57 = vld [vmem:[#allocation3] sm:$0xff]
    %v58 = vld [vmem:[#allocation3 + $0x8] sm:$0xff]
    %v59 = vld [vmem:[#allocation3 + $0x10] sm:$0xff]
    %v60 = vld [vmem:[#allocation3 + $0x18] sm:$0xff]
    %v61 = vld [vmem:[#allocation3 + $0x20] sm:$0xff]
    %v62 = vld [vmem:[#allocation3 + $0x28] sm:$0xff]
    %v63 = vld [vmem:[#allocation3 + $0x30] sm:$0xff]
    %v64 = vld [vmem:[#allocation3 + $0x38] sm:$0xff]
    %v65 = vld [vmem:[#allocation3 + $0x40] sm:$0xff]
    %v66 = vld [vmem:[#allocation3 + $0x48] sm:$0xff]
    %v67 = vld [vmem:[#allocation3 + $0x50] sm:$0xff]
    %v68 = vld [vmem:[#allocation3 + $0x58] sm:$0xff]
    %v69 = vld [vmem:[#allocation3 + $0x60] sm:$0xff]
    %v70 = vld [vmem:[#allocation3 + $0x68] sm:$0xff]
    %v71 = vld [vmem:[#allocation3 + $0x70] sm:$0xff]
    %v72 = vld [vmem:[#allocation3 + $0x78] sm:$0xff]
    %v73 = vld [vmem:[#allocation3 + $0x80] sm:$0xff]
    %v74 = vld [vmem:[#allocation3 + $0x88] sm:$0xff]
    %v75 = vld [vmem:[#allocation3 + $0x90] sm:$0xff]
    %v76 = vld [vmem:[#allocation3 + $0x98] sm:$0xff]
    %v77 = vld [vmem:[#allocation3 + $0xa0] sm:$0xff]
    %v78 = vld [vmem:[#allocation3 + $0xa8] sm:$0xff]
    %v79 = vld [vmem:[#allocation3 + $0xb0] sm:$0xff]
    %v80 = vld [vmem:[#allocation3 + $0xb8] sm:$0xff]
    %v81 = vld [vmem:[#allocation3 + $0xc0] sm:$0xff]
    %v82 = vld [vmem:[#allocation3 + $0xc8] sm:$0xff]
    %v83 = vld [vmem:[#allocation3 + $0xd0] sm:$0xff]
    %v84 = vld [vmem:[#allocation3 + $0xd8] sm:$0xff]
    %v85 = vld [vmem:[#allocation3 + $0xe0] sm:$0xff]
    %v86 = vld [vmem:[#allocation3 + $0xe8] sm:$0xff]
    %v87 = vld [vmem:[#allocation3 + $0xf0] sm:$0xff]
    %v88 = vld [vmem:[#allocation3 + $0xf8] sm:$0xff]
    %v89 = vld [vmem:[#allocation3 + $0x100] sm:$0xff]
    %v90 = vld [vmem:[#allocation3 + $0x108] sm:$0xff]
    %v91 = vld [vmem:[#allocation3 + $0x110] sm:$0xff]
    %v92 = vld [vmem:[#allocation3 + $0x118] sm:$0xff]
    %v93 = vld [vmem:[#allocation3 + $0x120] sm:$0xff]
    %v94 = vld [vmem:[#allocation3 + $0x128] sm:$0xff]
    %v95 = vld [vmem:[#allocation3 + $0x130] sm:$0xff]
    %v96 = vld [vmem:[#allocation3 + $0x138] sm:$0xff]
    %v97 = vld [vmem:[#allocation3 + $0x140] sm:$0xff]
    %v98 = vld [vmem:[#allocation3 + $0x148] sm:$0xff]
    %v99 = vld [vmem:[#allocation3 + $0x150] sm:$0xff]
    %v100 = vld [vmem:[#allocation3 + $0x158] sm:$0xff]
    %v101 = vld [vmem:[#allocation3 + $0x160] sm:$0xff]
    %v102 = vld [vmem:[#allocation3 + $0x168] sm:$0xff]
    %v103 = vld [vmem:[#allocation3 + $0x170] sm:$0xff]
    %v104 = vld [vmem:[#allocation3 + $0x178] sm:$0xff]
    %v105 = vld [vmem:[#allocation3 + $0x180] sm:$0xff]
    %v106 = vld [vmem:[#allocation3 + $0x188] sm:$0xff]
    %v107 = vld [vmem:[#allocation3 + $0x190] sm:$0xff]
    %v108 = vld [vmem:[#allocation3 + $0x198] sm:$0xff]
    %v109 = vld [vmem:[#allocation3 + $0x1a0] sm:$0xff]
    %v110 = vld [vmem:[#allocation3 + $0x1a8] sm:$0xff]
    %v111 = vld [vmem:[#allocation3 + $0x1b0] sm:$0xff]
    %v112 = vld [vmem:[#allocation3 + $0x1b8] sm:$0xff]
    %v113 = vld [vmem:[#allocation3 + $0x1c0] sm:$0xff]
    %v114 = vld [vmem:[#allocation3 + $0x1c8] sm:$0xff]
    %v115 = vld [vmem:[#allocation3 + $0x1d0] sm:$0xff]
    %v116 = vld [vmem:[#allocation3 + $0x1d8] sm:$0xff]
    %v117 = vld [vmem:[#allocation3 + $0x1e0] sm:$0xff]
    %v118 = vld [vmem:[#allocation3 + $0x1e8] sm:$0xff]
    %v119 = vld [vmem:[#allocation3 + $0x1f0] sm:$0xff]
    %v120 = vld [vmem:[#allocation3 + $0x1f8] sm:$0xff]
    %v121 = vld [vmem:[#allocation3 + $0x200] sm:$0xff]
    %v122 = vld [vmem:[#allocation3 + $0x208] sm:$0xff]
    %v123 = vld [vmem:[#allocation3 + $0x210] sm:$0xff]
    %v124 = vld [vmem:[#allocation3 + $0x218] sm:$0xff]
    %v125 = vld [vmem:[#allocation3 + $0x220] sm:$0xff]
    %v126 = vld [vmem:[#allocation3 + $0x228] sm:$0xff]
    %v127 = vld [vmem:[#allocation3 + $0x230] sm:$0xff]
    %v128 = vld [vmem:[#allocation3 + $0x238] sm:$0xff]
    %v129 = vld [vmem:[#allocation3 + $0x240] sm:$0xff]
    %v130 = vld [vmem:[#allocation3 + $0x248] sm:$0xff]
    %v131 = vld [vmem:[#allocation3 + $0x250] sm:$0xff]
    %v132 = vld [vmem:[#allocation3 + $0x258] sm:$0xff]
    %v133 = vld [vmem:[#allocation3 + $0x260] sm:$0xff]
    %v134 = vld [vmem:[#allocation3 + $0x268] sm:$0xff]
    %v135 = vld [vmem:[#allocation3 + $0x270] sm:$0xff]
    %v136 = vld [vmem:[#allocation3 + $0x278] sm:$0xff]
    %v137 = vld [vmem:[#allocation3 + $0x280] sm:$0xff]
    %v138 = vld [vmem:[#allocation3 + $0x288] sm:$0xff]
    %v139 = vld [vmem:[#allocation3 + $0x290] sm:$0xff]
    %v140 = vld [vmem:[#allocation3 + $0x298] sm:$0xff]
    %v141 = vld [vmem:[#allocation3 + $0x2a0] sm:$0xff]
    %v142 = vld [vmem:[#allocation3 + $0x2a8] sm:$0xff]
    %v143 = vld [vmem:[#allocation3 + $0x2b0] sm:$0xff]
    %v144 = vld [vmem:[#allocation3 + $0x2b8] sm:$0xff]
    %v145 = vld [vmem:[#allocation3 + $0x2c0] sm:$0xff]
    %v146 = vld [vmem:[#allocation3 + $0x2c8] sm:$0xff]
    %v147 = vld [vmem:[#allocation3 + $0x2d0] sm:$0xff]
    %v148 = vld [vmem:[#allocation3 + $0x2d8] sm:$0xff]
    %v149 = vld [vmem:[#allocation3 + $0x2e0] sm:$0xff]
    %v150 = vld [vmem:[#allocation3 + $0x2e8] sm:$0xff]
    %v151 = vld [vmem:[#allocation3 + $0x2f0] sm:$0xff]
    %v152 = vld [vmem:[#allocation3 + $0x2f8] sm:$0xff]
    %v153 = vld [vmem:[#allocation3 + $0x300] sm:$0xff]
    %v154 = vld [vmem:[#allocation3 + $0x308] sm:$0xff]
    %v155 = vpack.c.bf16 %v58, %v57
    %v156 = vpack.c.bf16 %v60, %v59
    %v157 = vpack.c.bf16 %v62, %v61
    %v158 = vpack.c.bf16 %v64, %v63
    %v159 = vpack.c.bf16 %v66, %v65
    %v160 = vpack.c.bf16 %v68, %v67
    %v161 = vpack.c.bf16 %v70, %v69
    %v162 = vpack.c.bf16 %v72, %v71
    %v163 = vpack.c.bf16 %v74, %v73
    %v164 = vpack.c.bf16 %v76, %v75
    %v165 = vpack.c.bf16 %v78, %v77
    %v166 = vpack.c.bf16 %v80, %v79
    %v167 = vpack.c.bf16 %v82, %v81
    %v168 = vpack.c.bf16 %v84, %v83
    %v169 = vpack.c.bf16 %v86, %v85
    %v170 = vpack.c.bf16 %v88, %v87
    %v171 = vpack.c.bf16 %v90, %v89
    %v172 = vpack.c.bf16 %v92, %v91
    %v173 = vpack.c.bf16 %v94, %v93
    %v174 = vpack.c.bf16 %v96, %v95
    %v175 = vpack.c.bf16 %v98, %v97
    %v176 = vpack.c.bf16 %v100, %v99
    %v177 = vpack.c.bf16 %v102, %v101
    %v178 = vpack.c.bf16 %v104, %v103
    %v179 = vpack.c.bf16 %v106, %v105
    %v180 = vpack.c.bf16 %v108, %v107
    %v181 = vpack.c.bf16 %v110, %v109
    %v182 = vpack.c.bf16 %v112, %v111
    %v183 = vpack.c.bf16 %v114, %v113
    %v184 = vpack.c.bf16 %v116, %v115
    %v185 = vpack.c.bf16 %v118, %v117
    %v186 = vpack.c.bf16 %v120, %v119
    %v187 = vpack.c.bf16 %v122, %v121
    %v188 = vpack.c.bf16 %v124, %v123
    %v189 = vpack.c.bf16 %v126, %v125
    %v190 = vpack.c.bf16 %v128, %v127
    %v191 = vpack.c.bf16 %v130, %v129
    %v192 = vpack.c.bf16 %v132, %v131
    %v193 = vpack.c.bf16 %v134, %v133
    %v194 = vpack.c.bf16 %v136, %v135
    %v195 = vpack.c.bf16 %v138, %v137
    %v196 = vpack.c.bf16 %v140, %v139
    %v197 = vpack.c.bf16 %v142, %v141
    %v198 = vpack.c.bf16 %v144, %v143
    %v199 = vpack.c.bf16 %v146, %v145
    %v200 = vpack.c.bf16 %v148, %v147
    %v201 = vpack.c.bf16 %v150, %v149
    %v202 = vpack.c.bf16 %v152, %v151
    %v203 = vpack.c.bf16 %v154, %v153
    %v204 = vld [vmem:[%s2] sm:$0x1]
    %v206 = vlaneseq
    %v207 = vshrl.u32 %v206, 7
    %v208 = vsub.s32 0, %v207
    %v209 = vrot.slane %v204, %v208
    %vm211 = vcmask 130048
    %v213 = vsel %vm211, %v56, 0
    %215 = vmatprep.subr.bf16.mxu0 0
    %216 = vmatpush1.bf16.msra.mxu0 %v155
    %217 = vmatprep.subr.bf16.mxu0 0
    %218 = vmatpush1.bf16.msra.mxu0 %v156
    %219 = vmatprep.subr.bf16.mxu0 0
    %220 = vmatpush1.bf16.msra.mxu0 %v157
    %221 = vmatprep.subr.bf16.mxu0 0
    %222 = vmatpush1.bf16.msra.mxu0 %v158
    %223 = vmatprep.subr.bf16.mxu0 0
    %224 = vmatpush1.bf16.msra.mxu0 %v159
    %225 = vmatprep.subr.bf16.mxu0 0
    %226 = vmatpush1.bf16.msra.mxu0 %v160
    %227 = vmatprep.subr.bf16.mxu0 0
    %228 = vmatpush1.bf16.msra.mxu0 %v161
    %229 = vmatprep.subr.bf16.mxu0 0
    %230 = vmatpush1.bf16.msra.mxu0 %v162
    %231 = vmatprep.subr.bf16.mxu0 0
    %232 = vmatpush1.bf16.msra.mxu0 %v163
    %233 = vmatprep.subr.bf16.mxu0 0
    %234 = vmatpush1.bf16.msra.mxu0 %v164
    %235 = vmatprep.subr.bf16.mxu0 0
    %236 = vmatpush1.bf16.msra.mxu0 %v165
    %237 = vmatprep.subr.bf16.mxu0 0
    %238 = vmatpush1.bf16.msra.mxu0 %v166
    %239 = vmatprep.subr.bf16.mxu0 0
    %240 = vmatpush1.bf16.msra.mxu0 %v167
    %241 = vmatprep.subr.bf16.mxu0 0
    %242 = vmatpush1.bf16.msra.mxu0 %v168
    %243 = vmatprep.subr.bf16.mxu0 0
    %244 = vmatpush1.bf16.msra.mxu0 %v169
    %245 = vmatprep.subr.bf16.mxu0 0
    %246 = vmatpush1.bf16.msra.mxu0 %v170
    %247 = vmatprep.mubr.bf16.mxu0 %v51
    %248 = vmatmul.mubr.bf16.gmra.mrb[0].mxu0 %v50
    %v249 = vpop.f32.mrb[0].mxu0
    %v250 = vadd.f32 %v209, %v249
    %v251 = vpop.f32.mrb[0].mxu0
    %v252 = vpop.f32.mrb[0].mxu0
    %v253 = vadd.f32 %v209, %v252
    %v254 = vpop.f32.mrb[0].mxu0
    %255 = vdwg.mxu0
    %256 = vmatprep.subr.bf16.mxu0 0
    %257 = vmatpush1.bf16.msra.mxu0 %v171
    %258 = vmatprep.subr.bf16.mxu0 0
    %259 = vmatpush1.bf16.msra.mxu0 %v172
    %260 = vmatprep.subr.bf16.mxu0 0
    %261 = vmatpush1.bf16.msra.mxu0 %v173
    %262 = vmatprep.subr.bf16.mxu0 0
    %263 = vmatpush1.bf16.msra.mxu0 %v174
    %264 = vmatprep.subr.bf16.mxu0 0
    %265 = vmatpush1.bf16.msra.mxu0 %v175
    %266 = vmatprep.subr.bf16.mxu0 0
    %267 = vmatpush1.bf16.msra.mxu0 %v176
    %268 = vmatprep.subr.bf16.mxu0 0
    %269 = vmatpush1.bf16.msra.mxu0 %v177
    %270 = vmatprep.subr.bf16.mxu0 0
    %271 = vmatpush1.bf16.msra.mxu0 %v178
    %272 = vmatprep.subr.bf16.mxu0 0
    %273 = vmatpush1.bf16.msra.mxu0 %v179
    %274 = vmatprep.subr.bf16.mxu0 0
    %275 = vmatpush1.bf16.msra.mxu0 %v180
    %276 = vmatprep.subr.bf16.mxu0 0
    %277 = vmatpush1.bf16.msra.mxu0 %v181
    %278 = vmatprep.subr.bf16.mxu0 0
    %279 = vmatpush1.bf16.msra.mxu0 %v182
    %280 = vmatprep.subr.bf16.mxu0 0
    %281 = vmatpush1.bf16.msra.mxu0 %v183
    %282 = vmatprep.subr.bf16.mxu0 0
    %283 = vmatpush1.bf16.msra.mxu0 %v184
    %284 = vmatprep.subr.bf16.mxu0 0
    %285 = vmatpush1.bf16.msra.mxu0 %v185
    %286 = vmatprep.subr.bf16.mxu0 0
    %287 = vmatpush1.bf16.msra.mxu0 %v186
    %288 = vmatprep.mubr.bf16.mxu0 %v53
    %289 = vmatmul.mubr.bf16.gmra.mrb[0].mxu0 %v52
    %v290 = vpop.f32.mrb[0].mxu0
    %v291 = vadd.f32 %v250, %v290
    %v292 = vpop.f32.mrb[0].mxu0
    %v293 = vpop.f32.mrb[0].mxu0
    %v294 = vadd.f32 %v253, %v293
    %v295 = vpop.f32.mrb[0].mxu0
    %296 = vdwg.mxu0
    %297 = vmatprep.subr.bf16.mxu0 0
    %298 = vmatpush1.bf16.msra.mxu0 %v187
    %299 = vmatprep.subr.bf16.mxu0 0
    %300 = vmatpush1.bf16.msra.mxu0 %v188
    %301 = vmatprep.subr.bf16.mxu0 0
    %302 = vmatpush1.bf16.msra.mxu0 %v189
    %303 = vmatprep.subr.bf16.mxu0 0
    %304 = vmatpush1.bf16.msra.mxu0 %v190
    %305 = vmatprep.subr.bf16.mxu0 0
    %306 = vmatpush1.bf16.msra.mxu0 %v191
    %307 = vmatprep.subr.bf16.mxu0 0
    %308 = vmatpush1.bf16.msra.mxu0 %v192
    %309 = vmatprep.subr.bf16.mxu0 0
    %310 = vmatpush1.bf16.msra.mxu0 %v193
    %311 = vmatprep.subr.bf16.mxu0 0
    %312 = vmatpush1.bf16.msra.mxu0 %v194
    %313 = vmatprep.subr.bf16.mxu0 0
    %314 = vmatpush1.bf16.msra.mxu0 %v195
    %315 = vmatprep.subr.bf16.mxu0 0
    %316 = vmatpush1.bf16.msra.mxu0 %v196
    %317 = vmatprep.subr.bf16.mxu0 0
    %318 = vmatpush1.bf16.msra.mxu0 %v197
    %319 = vmatprep.subr.bf16.mxu0 0
    %320 = vmatpush1.bf16.msra.mxu0 %v198
    %321 = vmatprep.subr.bf16.mxu0 0
    %322 = vmatpush1.bf16.msra.mxu0 %v199
    %323 = vmatprep.subr.bf16.mxu0 0
    %324 = vmatpush1.bf16.msra.mxu0 %v200
    %325 = vmatprep.subr.bf16.mxu0 0
    %326 = vmatpush1.bf16.msra.mxu0 %v201
    %327 = vmatprep.subr.bf16.mxu0 0
    %328 = vmatpush1.bf16.msra.mxu0 %v202
    %329 = vmatprep.mubr.bf16.mxu0 %v55
    %330 = vmatmul.mubr.bf16.gmra.mrb[0].mxu0 %v54
    %v331 = vpop.f32.mrb[0].mxu0
    %v332 = vadd.f32 %v291, %v331
    %v333 = vpop.f32.mrb[0].mxu0
    %v334 = vpop.f32.mrb[0].mxu0
    %v335 = vadd.f32 %v294, %v334
    %v336 = vpop.f32.mrb[0].mxu0
    %337 = vdwg.mxu0
    %338 = vmatprep.subr.bf16.mxu0 0
    %339 = vmatpush1.bf16.msra.mxu0 %v203
    %340 = vmatprep.subr.bf16.mxu0 0
    %341 = vmatpush1.bf16.msra.mxu0 0
    %342 = vmatprep.subr.bf16.mxu0 0
    %343 = vmatpush1.bf16.msra.mxu0 0
    %344 = vmatprep.subr.bf16.mxu0 0
    %345 = vmatpush1.bf16.msra.mxu0 0
    %346 = vmatprep.subr.bf16.mxu0 0
    %347 = vmatpush1.bf16.msra.mxu0 0
    %348 = vmatprep.subr.bf16.mxu0 0
    %349 = vmatpush1.bf16.msra.mxu0 0
    %350 = vmatprep.subr.bf16.mxu0 0
    %351 = vmatpush1.bf16.msra.mxu0 0
    %352 = vmatprep.subr.bf16.mxu0 0
    %353 = vmatpush1.bf16.msra.mxu0 0
    %354 = vmatprep.subr.bf16.mxu0 0
    %355 = vmatpush1.bf16.msra.mxu0 0
    %356 = vmatprep.subr.bf16.mxu0 0
    %357 = vmatpush1.bf16.msra.mxu0 0
    %358 = vmatprep.subr.bf16.mxu0 0
    %359 = vmatpush1.bf16.msra.mxu0 0
    %360 = vmatprep.subr.bf16.mxu0 0
    %361 = vmatpush1.bf16.msra.mxu0 0
    %362 = vmatprep.subr.bf16.mxu0 0
    %363 = vmatpush1.bf16.msra.mxu0 0
    %364 = vmatprep.subr.bf16.mxu0 0
    %365 = vmatpush1.bf16.msra.mxu0 0
    %366 = vmatprep.subr.bf16.mxu0 0
    %367 = vmatpush1.bf16.msra.mxu0 0
    %368 = vmatprep.subr.bf16.mxu0 0
    %369 = vmatpush1.bf16.msra.mxu0 0
    %370 = vmatprep.mubr.bf16.mxu0 0
    %371 = vmatmul.mubr.bf16.gmra.mrb[0].mxu0 %v213
    %v372 = vpop.f32.mrb[0].mxu0
    %v373 = vadd.f32 %v332, %v372
    %v374 = vpop.f32.mrb[0].mxu0
    %v375 = vpop.f32.mrb[0].mxu0
    %v376 = vadd.f32 %v335, %v375
    %v377 = vpop.f32.mrb[0].mxu0
    %378 = vdwg.mxu0
    %vm379 = vcmp.gt.f32.partialorder %v373, 0.0
    %vm380 = vcmp.gt.f32.partialorder %v376, 0.0
    %v381 = vmul.f32 %v373, 0.01
    %v382 = vmul.f32 %v376, 0.01
    %v383 = vsel %vm379, %v373, %v381
    %v384 = vsel %vm380, %v376, %v382
    %v385 = vld [vmem:[%s3] sm:$0x1]
    %v387 = vlaneseq
    %v388 = vshrl.u32 %v387, 7
    %v389 = vsub.s32 0, %v388
    %v390 = vrot.slane %v385, %v389
    %v392 = vmul.f32 %v383, %v390
    %v393 = vmul.f32 %v384, %v390
    %394 = vadd.xlane.f32.xlu0 %v392
    %v395 = vpop.xlane.xlu0 %394
    %396 = vadd.xlane.f32.xlu0 %v393
    %v397 = vpop.xlane.xlu0 %396
    %s398 = sld [smem:[#allocation2]]
    %v399 = vstv %s398
    %v400 = vadd.f32 %v395, %v399
    %v401 = vadd.f32 %v397, %v399
    %v402 = vsub.f32 0.0, %v400
    %v403 = vsub.f32 0.0, %v401
    %v404 = vmul.f32 %v402, 1.442695
    %v405 = vpow.pop %v404
    %v406 = vmul.f32 %v403, 1.442695
    %v407 = vpow.pop %v406
    %v408 = vadd.f32 %v405, 1.0
    %v409 = vadd.f32 %v407, 1.0
    %v410 = vrcp.pop %v408
    %v411 = vmul.f32 1.0, %v410
    %v412 = vrcp.pop %v409
    %v413 = vmul.f32 1.0, %v412
    %vm414 = vcmask 7168
    %415 = vst.msk [vmem:[%s5] sm:$0xff] %vm414, %v411
    %416 = vst.msk [vmem:[%s5 + $0x8] sm:$0xff] %vm414, %v413
    // Predicated region
    $region26: #{discriminator_forward.1} parent=1 // pred_check
      _
    $region27: #{discriminator_forward.1} parent=1 // pred_check_branch
      %418 = sbr.rel (0) target = $region29
    $region28: #{discriminator_forward.1} parent=1 // pred_region
      _
    $region29: #{discriminator_forward.1} parent=1 // pred_fallthru
      _
    // Predicated region
    $region30: #{discriminator_forward.1} parent=1 // pred_check
      _
    $region31: #{discriminator_forward.1} parent=1 // pred_check_branch
      %420 = sbr.rel (0) target = $region33
    $region32: #{discriminator_forward.1} parent=1 // pred_region
      _
    $region33: #{discriminator_forward.1} parent=1 // pred_fallthru
      _
    %421 = vsyncpa [#allocation4], 1

</llo_original>
